<compile_context>
chip_gen: v7x
topology: tpu7x:2x2x1
jax: 0.10.0
libtpu: 0.0.40
codegen_flags: <defaults>
</compile_context>

<pallas_src>
import math

import jax
import jax.numpy as jnp
from jax.experimental import pallas as pl
from jax.experimental.pallas import tpu as pltpu

LN_EPS = 1e-5


def _patch_merging_kernel(x_ref, we_ref, wo_ref, b_ref, o_ref):
    # x_ref:  (th, 2, Wq, 2C)  th merged-row groups; axis 1 = (even-h, odd-h)
    #                          rows of each 2x2 patch; last axis = two adjacent
    #                          W positions concatenated ([x0|x2] / [x1|x3]).
    # we_ref: (2C, N)          reduction weight for the even-h half (gamma folded)
    # wo_ref: (2C, N)          reduction weight for the odd-h half  (gamma folded)
    # b_ref:  (1, N)           beta folded through the linear (f32)
    # o_ref:  (th*Wq, N)
    xb = x_ref[...]
    th, _, wq, c2 = xb.shape
    rows = th * wq
    inv_n = 1.0 / (2.0 * c2)                       # 1 / (4*C)

    # LayerNorm statistics over the full 4C axis, always in f32 (v5e has no
    # bf16 VPU/EUP).  The two 2C halves are reduced separately and combined.
    e = xb[:, 0, :, :].reshape(rows, c2).astype(jnp.float32)
    o = xb[:, 1, :, :].reshape(rows, c2).astype(jnp.float32)

    mean = (jnp.sum(e, axis=-1, keepdims=True) +
            jnp.sum(o, axis=-1, keepdims=True)) * inv_n
    ec = e - mean
    oc = o - mean
    var = (jnp.sum(ec * ec, axis=-1, keepdims=True) +
           jnp.sum(oc * oc, axis=-1, keepdims=True)) * inv_n
    r = jax.lax.rsqrt(var + LN_EPS)

    # MXU operands in the storage dtype (bf16 on v5e/v6e/v7x); f32 accumulation.
    he = (ec * r).astype(we_ref.dtype)
    ho = (oc * r).astype(wo_ref.dtype)

    acc = jnp.dot(he, we_ref[...], preferred_element_type=jnp.float32)
    acc = acc + jnp.dot(ho, wo_ref[...], preferred_element_type=jnp.float32)
    acc = acc + b_ref[...].astype(jnp.float32)
    o_ref[...] = acc.astype(o_ref.dtype)


def patch_merging(x, gamma, beta, w_t, input_resolution, *, row_tile=1024,
                  out_dtype=None):
    """x: (B, H*W, C) -> (B, H/2 * W/2, 2*C).

    gamma/beta: LayerNorm(4C) params; w_t: (4C, 2C) = reduction.weight.T.
    """
    H, W = input_resolution
    B, L, C = x.shape
    assert L == H * W, "input feature has wrong size"
    assert H % 2 == 0 and W % 2 == 0, f"x size ({H}*{W}) are not even."
    hq, wq = H // 2, W // 2
    c2, c4 = 2 * C, 4 * C
    out_dtype = x.dtype if out_dtype is None else out_dtype

    # ---- zero-copy relayout: (B, H*W, C) -> (B*H/2, 2, W/2, 2C) ----
    # Pure row-major reshape; no HBM data movement.  Kernel feature order is
    # [x0, x2 | x1, x3]; parameters are permuted to match below.
    xk = x.reshape(B * hq, 2, wq, c2)

    # ---- fold LN affine into the linear + permute rows to kernel order ----
    w32 = w_t.astype(jnp.float32)
    w_eff = gamma.astype(jnp.float32)[:, None] * w32                 # (4C, 2C)
    b_eff = beta.astype(jnp.float32) @ w32                           # (2C,)
    w_even = jnp.concatenate([w_eff[0:C], w_eff[2 * C:3 * C]], axis=0)  # x0;x2
    w_odd = jnp.concatenate([w_eff[C:2 * C], w_eff[3 * C:4 * C]], axis=0)  # x1;x3

    # Lane-dense output: pad N up to a multiple of 128, slice afterwards.
    n_out = ((c2 + 127) // 128) * 128
    if n_out != c2:
        w_even = jnp.pad(w_even, ((0, 0), (0, n_out - c2)))
        w_odd = jnp.pad(w_odd, ((0, 0), (0, n_out - c2)))
        b_eff = jnp.pad(b_eff, (0, n_out - c2))
    w_even = w_even.astype(x.dtype)
    w_odd = w_odd.astype(x.dtype)
    b_eff = b_eff.reshape(1, n_out)                  # stays f32

    # ---- tile choice: ~row_tile matmul rows per grid step ----
    total_pairs = B * hq                             # merged-row groups
    rows_out = total_pairs * wq
    mult = 8 // math.gcd(wq, 8)                      # keep (th*wq) % 8 == 0
    th_target = max(1, row_tile // wq)
    if th_target >= total_pairs:
        # One tile covers everything; split in two (if clean) so the grid can
        # be sharded across both TensorCores on v7x.
        half = -(-((total_pairs + 1) // 2) // mult) * mult
        th = half if 0 < half < total_pairs else total_pairs
    else:
        th = max(mult, (th_target // mult) * mult)
    grid = (pl.cdiv(total_pairs, th),)
    tm = th * wq                                     # matmul rows per tile

    itemsize = jnp.dtype(x.dtype).itemsize
    cost = pl.CostEstimate(
        flops=2 * rows_out * c4 * n_out,
        transcendentals=rows_out,
        bytes_accessed=(xk.size * itemsize
                        + (w_even.size + w_odd.size) * itemsize
                        + b_eff.size * 4
                        + rows_out * n_out * jnp.dtype(out_dtype).itemsize),
    )

    out2d = pl.pallas_call(
        _patch_merging_kernel,
        out_shape=jax.ShapeDtypeStruct((rows_out, n_out), out_dtype),
        grid_spec=pltpu.PrefetchScalarGridSpec(
            num_scalar_prefetch=0,
            grid=grid,
            in_specs=[
                pl.BlockSpec((th, 2, wq, c2), lambda i: (i, 0, 0, 0)),
                pl.BlockSpec((c2, n_out), lambda i: (0, 0)),
                pl.BlockSpec((c2, n_out), lambda i: (0, 0)),
                pl.BlockSpec((1, n_out), lambda i: (0, 0)),
            ],
            out_specs=pl.BlockSpec((tm, n_out), lambda i: (i, 0)),
        ),
        compiler_params=pltpu.CompilerParams(
            dimension_semantics=("parallel",)),
        cost_estimate=cost,
    )(xk, w_even, w_odd, b_eff)

    if n_out != c2:
        out2d = out2d[:, :c2]
    return out2d.reshape(B, hq * wq, c2)


def patch_merging_ref(x, gamma, beta, w_t, input_resolution):
    """Pure-JAX reference mirroring the PyTorch forward (concat order x0..x3)."""
    H, W = input_resolution
    B, L, C = x.shape
    xg = x.reshape(B, H, W, C)
    x0 = xg[:, 0::2, 0::2, :]
    x1 = xg[:, 1::2, 0::2, :]
    x2 = xg[:, 0::2, 1::2, :]
    x3 = xg[:, 1::2, 1::2, :]
    xc = jnp.concatenate([x0, x1, x2, x3], axis=-1).reshape(B, -1, 4 * C)
    xc = xc.astype(jnp.float32)
    mean = jnp.mean(xc, axis=-1, keepdims=True)
    var = jnp.mean((xc - mean) ** 2, axis=-1, keepdims=True)
    xhat = (xc - mean) * jax.lax.rsqrt(var + LN_EPS)
    y = xhat * gamma.astype(jnp.float32) + beta.astype(jnp.float32)
    out = jnp.dot(y, w_t.astype(jnp.float32),
                  precision=jax.lax.Precision.HIGHEST)
    return out


if __name__ == "__main__":
    # Small shapes consistent with the module: B=2, dim C=32, resolution 16x16.
    B, H, W, C = 2, 16, 16, 32
    key = jax.random.PRNGKey(0)
    kx, kw, kg, kb = jax.random.split(key, 4)

    x = jax.random.normal(kx, (B, H * W, C), dtype=jnp.float32)

    # Parameters (deterministic, synthetic):
    #   reduction: nn.Linear(4C, 2C, bias=False) -> weight (2C, 4C); we use W^T.
    #   norm:      nn.LayerNorm(4C) -> gamma (4C,), beta (4C,).
    w_t = (jax.random.normal(kw, (4 * C, 2 * C), dtype=jnp.float32)
           * (1.0 / jnp.sqrt(4.0 * C)))
    gamma = 1.0 + 0.1 * jax.random.normal(kg, (4 * C,), dtype=jnp.float32)
    beta = 0.1 * jax.random.normal(kb, (4 * C,), dtype=jnp.float32)

    # f32 storage path.
    out = jax.block_until_ready(patch_merging(x, gamma, beta, w_t, (H, W)))
    ref = patch_merging_ref(x, gamma, beta, w_t, (H, W))
    assert out.shape == (B, (H // 2) * (W // 2), 2 * C), out.shape
    assert jnp.allclose(out.astype(jnp.float32), ref, atol=1e-2, rtol=1e-2), \
        float(jnp.max(jnp.abs(out.astype(jnp.float32) - ref)))

    # bf16 storage path (recommended for v5e/v6e/v7x): half the HBM bytes,
    # LN stats + accumulation still in f32 inside the kernel.
    x_bf = x.astype(jnp.bfloat16)
    out_bf = jax.block_until_ready(patch_merging(x_bf, gamma, beta, w_t, (H, W)))
    ref_bf = patch_merging_ref(x_bf.astype(jnp.float32), gamma, beta, w_t, (H, W))
    assert jnp.allclose(out_bf.astype(jnp.float32), ref_bf, atol=1e-1, rtol=1e-1)

    print("KERNEL_OK")
</pallas_src>

<mosaic_0001>
module attributes {stable_mosaic.version = 11 : i64} {
  func.func @_patch_merging_kernel(%arg0: i32, %arg1: memref<8x2x8x64xf32, #tpu.memory_space<vmem>>, %arg2: memref<64x128xf32, #tpu.memory_space<vmem>>, %arg3: memref<64x128xf32, #tpu.memory_space<vmem>>, %arg4: memref<1x128xf32, #tpu.memory_space<vmem>>, %arg5: memref<64x128xf32, #tpu.memory_space<vmem>>) attributes {dimension_semantics = [#tpu.dimension_semantics<parallel>], iteration_bounds = array<i64: 2>, scalar_prefetch = 0 : i64, scratch_operands = 0 : i64, tpu.core_type = #tpu.core_type<tc>, window_params = [{transform_indices = @transform_0, window_bounds = array<i64: 8, 2, 8, 64>}, {pipeline_mode = #tpu.pipeline_mode<synchronous>, transform_indices = @transform_1, window_bounds = array<i64: 64, 128>}, {pipeline_mode = #tpu.pipeline_mode<synchronous>, transform_indices = @transform_2, window_bounds = array<i64: 64, 128>}, {pipeline_mode = #tpu.pipeline_mode<synchronous>, transform_indices = @transform_3, window_bounds = array<i64: 1, 128>}, {transform_indices = @transform_4, window_bounds = array<i64: 64, 128>}]} {
    %c0 = arith.constant 0 : index
    %c0_0 = arith.constant 0 : index
    %c0_1 = arith.constant 0 : index
    %c0_2 = arith.constant 0 : index
    %0 = vector.load %arg1[%c0, %c0_0, %c0_1, %c0_2] : memref<8x2x8x64xf32, #tpu.memory_space<vmem>>, vector<8x2x8x64xf32>
    %1 = vector.extract_strided_slice %0 {offsets = [0, 0, 0, 0], sizes = [8, 1, 8, 64], strides = [1, 1, 1, 1]} : vector<8x2x8x64xf32> to vector<8x1x8x64xf32>
    %2 = vector.shape_cast %1 : vector<8x1x8x64xf32> to vector<8x8x64xf32>
    %3 = vector.shape_cast %2 : vector<8x8x64xf32> to vector<64x64xf32>
    %4 = vector.extract_strided_slice %0 {offsets = [0, 1, 0, 0], sizes = [8, 1, 8, 64], strides = [1, 1, 1, 1]} : vector<8x2x8x64xf32> to vector<8x1x8x64xf32>
    %5 = vector.shape_cast %4 : vector<8x1x8x64xf32> to vector<8x8x64xf32>
    %6 = vector.shape_cast %5 : vector<8x8x64xf32> to vector<64x64xf32>
    %cst = arith.constant dense<0.000000e+00> : vector<64xf32>
    %7 = vector.multi_reduction <add>, %3, %cst [1] : vector<64x64xf32> to vector<64xf32>
    %8 = vector.shape_cast %7 : vector<64xf32> to vector<64x1xf32>
    %cst_3 = arith.constant dense<0.000000e+00> : vector<64xf32>
    %9 = vector.multi_reduction <add>, %6, %cst_3 [1] : vector<64x64xf32> to vector<64xf32>
    %10 = vector.shape_cast %9 : vector<64xf32> to vector<64x1xf32>
    %11 = arith.addf %8, %10 : vector<64x1xf32>
    %cst_4 = arith.constant 7.812500e-03 : f32
    %12 = vector.broadcast %cst_4 : f32 to vector<64x1xf32>
    %13 = arith.mulf %11, %12 : vector<64x1xf32>
    %14 = vector.broadcast %13 : vector<64x1xf32> to vector<64x64xf32>
    %15 = arith.subf %3, %14 : vector<64x64xf32>
    %16 = vector.broadcast %13 : vector<64x1xf32> to vector<64x64xf32>
    %17 = arith.subf %6, %16 : vector<64x64xf32>
    %18 = arith.mulf %15, %15 : vector<64x64xf32>
    %cst_5 = arith.constant dense<0.000000e+00> : vector<64xf32>
    %19 = vector.multi_reduction <add>, %18, %cst_5 [1] : vector<64x64xf32> to vector<64xf32>
    %20 = vector.shape_cast %19 : vector<64xf32> to vector<64x1xf32>
    %21 = arith.mulf %17, %17 : vector<64x64xf32>
    %cst_6 = arith.constant dense<0.000000e+00> : vector<64xf32>
    %22 = vector.multi_reduction <add>, %21, %cst_6 [1] : vector<64x64xf32> to vector<64xf32>
    %23 = vector.shape_cast %22 : vector<64xf32> to vector<64x1xf32>
    %24 = arith.addf %20, %23 : vector<64x1xf32>
    %cst_7 = arith.constant 7.812500e-03 : f32
    %25 = vector.broadcast %cst_7 : f32 to vector<64x1xf32>
    %26 = arith.mulf %24, %25 : vector<64x1xf32>
    %cst_8 = arith.constant 9.99999974E-6 : f32
    %27 = vector.broadcast %cst_8 : f32 to vector<64x1xf32>
    %28 = arith.addf %26, %27 : vector<64x1xf32>
    %29 = math.rsqrt %28 : vector<64x1xf32>
    %30 = vector.broadcast %29 : vector<64x1xf32> to vector<64x64xf32>
    %31 = arith.mulf %15, %30 : vector<64x64xf32>
    %32 = vector.broadcast %29 : vector<64x1xf32> to vector<64x64xf32>
    %33 = arith.mulf %17, %32 : vector<64x64xf32>
    %c0_9 = arith.constant 0 : index
    %c0_10 = arith.constant 0 : index
    %34 = vector.load %arg2[%c0_9, %c0_10] : memref<64x128xf32, #tpu.memory_space<vmem>>, vector<64x128xf32>
    %cst_11 = arith.constant dense<0.000000e+00> : vector<64x128xf32>
    %35 = tpu.matmul %31, %34, %cst_11 {dimension_numbers = #tpu.dot_dimension_numbers<[1], [0], [0], [1], [0, 0, 1, 1], [], []>} : vector<64x64xf32>, vector<64x128xf32>, vector<64x128xf32> -> vector<64x128xf32>
    %c0_12 = arith.constant 0 : index
    %c0_13 = arith.constant 0 : index
    %36 = vector.load %arg3[%c0_12, %c0_13] : memref<64x128xf32, #tpu.memory_space<vmem>>, vector<64x128xf32>
    %cst_14 = arith.constant dense<0.000000e+00> : vector<64x128xf32>
    %37 = tpu.matmul %33, %36, %cst_14 {dimension_numbers = #tpu.dot_dimension_numbers<[1], [0], [0], [1], [0, 0, 1, 1], [], []>} : vector<64x64xf32>, vector<64x128xf32>, vector<64x128xf32> -> vector<64x128xf32>
    %38 = arith.addf %35, %37 : vector<64x128xf32>
    %c0_15 = arith.constant 0 : index
    %c0_16 = arith.constant 0 : index
    %39 = vector.load %arg4[%c0_15, %c0_16] : memref<1x128xf32, #tpu.memory_space<vmem>>, vector<1x128xf32>
    %40 = vector.broadcast %39 : vector<1x128xf32> to vector<64x128xf32>
    %41 = arith.addf %38, %40 : vector<64x128xf32>
    %c0_17 = arith.constant 0 : index
    %c0_18 = arith.constant 0 : index
    %42 = vector.load %arg5[%c0_17, %c0_18] : memref<64x128xf32, #tpu.memory_space<vmem>>, vector<64x128xf32>
    tpu.vector_store %arg5[%c0_17, %c0_18], %41 {strides = array<i32>} : memref<64x128xf32, #tpu.memory_space<vmem>>, vector<64x128xf32>,
    return
  }
  func.func @transform_0(%arg0: i32) -> (i32, i32, i32, i32) {
    %c0_i32 = arith.constant 0 : i32
    %c0_i32_0 = arith.constant 0 : i32
    %c0_i32_1 = arith.constant 0 : i32
    %c0_i32_2 = arith.constant 0 : i32
    return %arg0, %c0_i32, %c0_i32_0, %c0_i32_1 : i32, i32, i32, i32
  }
  func.func @transform_1(%arg0: i32) -> (i32, i32) {
    %c0_i32 = arith.constant 0 : i32
    %c0_i32_0 = arith.constant 0 : i32
    %c0_i32_1 = arith.constant 0 : i32
    return %c0_i32, %c0_i32_0 : i32, i32
  }
  func.func @transform_2(%arg0: i32) -> (i32, i32) {
    %c0_i32 = arith.constant 0 : i32
    %c0_i32_0 = arith.constant 0 : i32
    %c0_i32_1 = arith.constant 0 : i32
    return %c0_i32, %c0_i32_0 : i32, i32
  }
  func.func @transform_3(%arg0: i32) -> (i32, i32) {
    %c0_i32 = arith.constant 0 : i32
    %c0_i32_0 = arith.constant 0 : i32
    %c0_i32_1 = arith.constant 0 : i32
    return %c0_i32, %c0_i32_0 : i32, i32
  }
  func.func @transform_4(%arg0: i32) -> (i32, i32) {
    %c0_i32 = arith.constant 0 : i32
    %c0_i32_0 = arith.constant 0 : i32
    return %arg0, %c0_i32 : i32, i32
  }
}

</mosaic_0001>

<llo_original>
// kernel: tpu_custom_call.1
$region0: #{tpu_custom_call.1}
  #allocation0 [shape = 'u32[]', space=smem, size = 0x4, offset = 0x4, fixed_abs, tag = 'smem constant byte address 0x4 - core index']
  #allocation1 [shape = 'u32[144,128]{1,0:T(1,128)}', space=vmem, size = 0x12000, scoped, tag = 'internal scratch']
  %s0 = inlined_call_operand.hbm [shape: f32[16,2,8,64], index: 0, kind: input, shape index: {}]
  %s1 = inlined_call_operand.hbm [shape: f32[64,128], index: 1, kind: input, shape index: {}]
  %s2 = inlined_call_operand.hbm [shape: f32[64,128], index: 2, kind: input, shape index: {}]
  %s3 = inlined_call_operand.vmem [shape: f32[1,128], index: 3, kind: input, shape index: {}]
  %s4 = inlined_call_operand.hbm [shape: f32[128,128], index: 4, kind: output, shape index: {}]
  %s5 = sld [smem:[#allocation0]]
  $region61: #{tpu_custom_call.1} parent=0
    _
  %s7 = ssub.s32 1, %s5
  %s8 = scalar_select 0, %s7, %s5
  $region1: #{tpu_custom_call.1} parent=0
    #allocation2 [shape = 'u8[131072]{0}', space=vmem, size = 0x20000, scoped, tag = 'input window, operand 0']
    #allocation3 [shape = 's32[2]{0}', space=sflag, size = 0x8, scoped, tag = 'scoped memory for tpu_custom_call.1']
    #allocation4 [shape = 's32[2]{0}', space=sflag, size = 0x8, scoped, tag = 'scoped memory for tpu_custom_call.1']
    #allocation5 [shape = 'u8[32768]{0}', space=vmem, size = 0x8000, scoped, tag = 'input window, operand 1, single buffered']
    #allocation6 [shape = 's32[1]{0}', space=sflag, size = 0x4, scoped, tag = 'scoped memory for tpu_custom_call.1']
    #allocation7 [shape = 'u8[32768]{0}', space=vmem, size = 0x8000, scoped, tag = 'input window, operand 2, single buffered']
    #allocation8 [shape = 'u8[65536]{0}', space=vmem, size = 0x10000, scoped, tag = 'output window, operand 0']
    %9 = vsyncpa [#allocation3], 0
    %s10 = scalar_lea.sflag [#allocation3], 1
    %11 = vsyncpa %s10, 0
    %12 = vsyncpa [#allocation6], 0
    %13 = vsyncpa [#allocation4], 0
    %s14 = scalar_lea.sflag [#allocation4], 1
    %15 = vsyncpa %s14, 0
    loop: start=0, step=1, limit=4
    $region2: #{tpu_custom_call.1} parent=1 // loop_pre_header
      _
    $region3: #{tpu_custom_call.1} parent=1 // loop_header
      %s17 = sphi 0, %s21
      %p18 = scmp.ge.s32.totalorder %s17, 4
      %s27 = sphi 0, %s29
      %s30 = sphi 0, %s27
      %s31 = sphi 0, %s30
      %s47 = sphi 0, %s31
      %s51 = sphi 0, %s51
      %s53 = sphi 0, %s51
      %s54 = sphi 0, %s53
      %s68 = sphi 0, %s54
      %s72 = sphi 0, %s72
      %s74 = sphi 0, %s72
      %s75 = sphi 0, %s74
      %s89 = sphi 0, %s75
      %s93 = sphi 0, %s93
      %s95 = sphi 0, %s93
      %s96 = sphi 0, %s95
      %s110 = sphi 0, %s96
      %s116 = sphi 0, %s118
      %s119 = sphi 0, %s116
      %s120 = sphi 0, %s119
      %s136 = sphi 0, %s120
    $region4: #{tpu_custom_call.1} parent=1 // loop_header_branch
      %20 = sbr.rel (%p18) target = $region8
    $region5: #{tpu_custom_call.1} parent=1 // loop_body
      %s22 = ssub.s32 %s17, 1
      %s23 = ssub.s32 %s17, 2
      %s24 = sadd.s32 %s17, 1
      %s25 = ssub.s32 %s17, %s24
      %p26 = scmp.eq.s32.totalorder %s25, 0
      %s28 = sadd.s32 %s27, 1
      %s29 = scalar_select %p26, %s27, %s28
      %p32 = pneg %p26
      %p33 = scmp.eq.s32.totalorder %s17, 1
      %p34 = por %p32, %p33
      %p35 = scmp.ne.s32.totalorder %s27, %s30
      %p36 = scmp.eq.s32.totalorder %s17, 0
      %p37 = por %p35, %p36
      %p38 = scmp.ne.s32.totalorder %s27, %s30
      %p39 = scmp.eq.s32.totalorder %s22, 1
      %p40 = por %p38, %p39
      %p41 = scmp.ne.s32.totalorder %s30, %s31
      %p42 = scmp.eq.s32.totalorder %s22, 0
      %p43 = por %p41, %p42
      %p44 = scmp.ne.s32.totalorder %s30, %s31
      %p45 = scmp.eq.s32.totalorder %s23, 1
      %p46 = por %p44, %p45
      %p48 = scmp.ne.s32.totalorder %s31, %s47
      %p49 = scmp.eq.s32.totalorder %s23, 0
      %p50 = por %p48, %p49
      %s52 = sadd.s32 %s51, 1
      %p55 = scmp.eq.s32.totalorder %s17, 1
      %p56 = scmp.ne.s32.totalorder %s51, %s53
      %p57 = scmp.eq.s32.totalorder %s17, 0
      %p58 = por %p56, %p57
      %p59 = scmp.ne.s32.totalorder %s51, %s53
      %p60 = scmp.eq.s32.totalorder %s22, 1
      %p61 = por %p59, %p60
      %p62 = scmp.ne.s32.totalorder %s53, %s54
      %p63 = scmp.eq.s32.totalorder %s22, 0
      %p64 = por %p62, %p63
      %p65 = scmp.ne.s32.totalorder %s53, %s54
      %p66 = scmp.eq.s32.totalorder %s23, 1
      %p67 = por %p65, %p66
      %p69 = scmp.ne.s32.totalorder %s54, %s68
      %p70 = scmp.eq.s32.totalorder %s23, 0
      %p71 = por %p69, %p70
      %s73 = sadd.s32 %s72, 1
      %p76 = scmp.eq.s32.totalorder %s17, 1
      %p77 = scmp.ne.s32.totalorder %s72, %s74
      %p78 = scmp.eq.s32.totalorder %s17, 0
      %p79 = por %p77, %p78
      %p80 = scmp.ne.s32.totalorder %s72, %s74
      %p81 = scmp.eq.s32.totalorder %s22, 1
      %p82 = por %p80, %p81
      %p83 = scmp.ne.s32.totalorder %s74, %s75
      %p84 = scmp.eq.s32.totalorder %s22, 0
      %p85 = por %p83, %p84
      %p86 = scmp.ne.s32.totalorder %s74, %s75
      %p87 = scmp.eq.s32.totalorder %s23, 1
      %p88 = por %p86, %p87
      %p90 = scmp.ne.s32.totalorder %s75, %s89
      %p91 = scmp.eq.s32.totalorder %s23, 0
      %p92 = por %p90, %p91
      %s94 = sadd.s32 %s93, 1
      %p97 = scmp.eq.s32.totalorder %s17, 1
      %p98 = scmp.ne.s32.totalorder %s93, %s95
      %p99 = scmp.eq.s32.totalorder %s17, 0
      %p100 = por %p98, %p99
      %p101 = scmp.ne.s32.totalorder %s93, %s95
      %p102 = scmp.eq.s32.totalorder %s22, 1
      %p103 = por %p101, %p102
      %p104 = scmp.ne.s32.totalorder %s95, %s96
      %p105 = scmp.eq.s32.totalorder %s22, 0
      %p106 = por %p104, %p105
      %p107 = scmp.ne.s32.totalorder %s95, %s96
      %p108 = scmp.eq.s32.totalorder %s23, 1
      %p109 = por %p107, %p108
      %p111 = scmp.ne.s32.totalorder %s96, %s110
      %p112 = scmp.eq.s32.totalorder %s23, 0
      %p113 = por %p111, %p112
      %s114 = ssub.s32 %s17, %s24
      %p115 = scmp.eq.s32.totalorder %s114, 0
      %s117 = sadd.s32 %s116, 1
      %s118 = scalar_select %p115, %s116, %s117
      %p121 = pneg %p115
      %p122 = scmp.eq.s32.totalorder %s17, 1
      %p123 = por %p121, %p122
      %p124 = scmp.ne.s32.totalorder %s116, %s119
      %p125 = scmp.eq.s32.totalorder %s17, 0
      %p126 = por %p124, %p125
      %p127 = scmp.ne.s32.totalorder %s116, %s119
      %p128 = scmp.eq.s32.totalorder %s22, 1
      %p129 = por %p127, %p128
      %p130 = scmp.ne.s32.totalorder %s119, %s120
      %p131 = scmp.eq.s32.totalorder %s22, 0
      %p132 = por %p130, %p131
      %p133 = scmp.ne.s32.totalorder %s119, %s120
      %p134 = scmp.eq.s32.totalorder %s23, 1
      %p135 = por %p133, %p134
      %p137 = scmp.ne.s32.totalorder %s120, %s136
      %p138 = scmp.eq.s32.totalorder %s23, 0
      %p139 = por %p137, %p138
      %p140 = scmp.le.s32.totalorder 1, %s17
      %p141 = scmp.lt.s32.totalorder %s17, 3
      %p142 = pnand %p140, %p141
      %p143 = pneg %p142
      // Predicated region
      $region9: #{tpu_custom_call.1} parent=5 // pred_check
        _
      $region10: #{tpu_custom_call.1} parent=5 // pred_check_branch
        %145 = sbr.rel (%p142) target = $region12
      $region11: #{tpu_custom_call.1} parent=5 // pred_region
        %s146 = ssub.s32 %s17, 1
        // Predicated region
        $region13: #{tpu_custom_call.1} parent=11 // pred_check
          %p147 = pneg %p64
        $region14: #{tpu_custom_call.1} parent=11 // pred_check_branch
          %149 = sbr.rel (%p147) target = $region16
        $region15: #{tpu_custom_call.1} parent=11 // pred_region
          %s151 = ssub.s32 1024, 1024
          %152 = vsyncadd [#allocation6], %s151
          %s153 = sshll.u32 [#allocation5], 4
          %s154 = int_to_ptr.vmem [resolvable:$true] %s153
          %159 = dma.hbm_to_vmem [thread:$0]  %s1, 1024, %s154, [#allocation6], 128, 128, 8
        $region16: #{tpu_custom_call.1} parent=11 // pred_fallthru
          _
        // Predicated region
        $region17: #{tpu_custom_call.1} parent=11 // pred_check
          %p160 = pneg %p85
        $region18: #{tpu_custom_call.1} parent=11 // pred_check_branch
          %162 = sbr.rel (%p160) target = $region20
        $region19: #{tpu_custom_call.1} parent=11 // pred_region
          %s164 = ssub.s32 1024, 1024
          %165 = vsyncadd [#allocation6], %s164
          %s166 = sshll.u32 [#allocation7], 4
          %s167 = int_to_ptr.vmem [resolvable:$true] %s166
          %172 = dma.hbm_to_vmem [thread:$0]  %s2, 1024, %s167, [#allocation6], 128, 128, 8
        $region20: #{tpu_custom_call.1} parent=11 // pred_fallthru
          _
        // Predicated region
        $region21: #{tpu_custom_call.1} parent=11 // pred_check
          %p173 = pneg %p106
        $region22: #{tpu_custom_call.1} parent=11 // pred_check_branch
          %175 = sbr.rel (%p173) target = $region24
        $region23: #{tpu_custom_call.1} parent=11 // pred_region
          _
        $region24: #{tpu_custom_call.1} parent=11 // pred_fallthru
          _
      $region12: #{tpu_custom_call.1} parent=5 // pred_fallthru
        _
      %p176 = scmp.lt.s32.totalorder %s17, 2
      // Predicated region
      $region25: #{tpu_custom_call.1} parent=5 // pred_check
        %p177 = pneg %p176
      $region26: #{tpu_custom_call.1} parent=5 // pred_check_branch
        %179 = sbr.rel (%p177) target = $region28
      $region27: #{tpu_custom_call.1} parent=5 // pred_region
        // Predicated region
        $region29: #{tpu_custom_call.1} parent=27 // pred_check
          %p180 = pneg %p37
        $region30: #{tpu_custom_call.1} parent=27 // pred_check_branch
          %182 = sbr.rel (%p180) target = $region32
        $region31: #{tpu_custom_call.1} parent=27 // pred_region
          %s183 = sand.u32 %s27, 1
          %s184 = scalar_lea.sflag [#allocation3], %s183
          %s185 = sand.u32 %s27, 1
          %s186 = smul.addr %s185, 128
          %s187 = scalar_lea.vmem [#allocation2], %s186
          %s188 = smul.u32 8, %s17
          %s190 = ssub.s32 2048, 2048
          %191 = vsyncadd %s184, %s190
          %s192 = smul.addr %s188, 2
          %s193 = smul.addr %s192, 128
          %s194 = scalar_lea.hbm %s0, %s193
          %s195 = sshll.u32 %s187, 4
          %s196 = int_to_ptr.vmem [resolvable:$true] %s195
          %201 = dma.hbm_to_vmem [thread:$0]  %s194, 2048, %s196, %s184, 128, 128, 8
        $region32: #{tpu_custom_call.1} parent=27 // pred_fallthru
          _
      $region28: #{tpu_custom_call.1} parent=5 // pred_fallthru
        _
      %p202 = scmp.le.s32.totalorder 1, %s17
      %p203 = scmp.lt.s32.totalorder %s17, 3
      %p204 = pnand %p202, %p203
      %p205 = pneg %p204
      // Predicated region
      $region33: #{tpu_custom_call.1} parent=5 // pred_check
        _
      $region34: #{tpu_custom_call.1} parent=5 // pred_check_branch
        %207 = sbr.rel (%p204) target = $region36
      $region35: #{tpu_custom_call.1} parent=5 // pred_region
        %s208 = ssub.s32 %s17, 1
        %s209 = sand.u32 %s30, 1
        %s210 = scalar_lea.sflag [#allocation3], %s209
        %s211 = sand.u32 %s30, 1
        %s212 = smul.addr %s211, 128
        %s213 = scalar_lea.vmem [#allocation2], %s212
        // Predicated region
        $region37: #{tpu_custom_call.1} parent=35 // pred_check
          %p214 = pneg %p43
        $region38: #{tpu_custom_call.1} parent=35 // pred_check_branch
          %216 = sbr.rel (%p214) target = $region40
        $region39: #{tpu_custom_call.1} parent=35 // pred_region
          %217 = dma.done %s210, 2048
        $region40: #{tpu_custom_call.1} parent=35 // pred_fallthru
          _
        // Predicated region
        $region41: #{tpu_custom_call.1} parent=35 // pred_check
          %p218 = pneg %p64
        $region42: #{tpu_custom_call.1} parent=35 // pred_check_branch
          %220 = sbr.rel (%p218) target = $region44
        $region43: #{tpu_custom_call.1} parent=35 // pred_region
          %221 = dma.done [#allocation6], 1024
        $region44: #{tpu_custom_call.1} parent=35 // pred_fallthru
          _
        // Predicated region
        $region45: #{tpu_custom_call.1} parent=35 // pred_check
          %p222 = pneg %p85
        $region46: #{tpu_custom_call.1} parent=35 // pred_check_branch
          %224 = sbr.rel (%p222) target = $region48
        $region47: #{tpu_custom_call.1} parent=35 // pred_region
          %225 = dma.done [#allocation6], 1024
        $region48: #{tpu_custom_call.1} parent=35 // pred_fallthru
          _
        %s226 = sand.u32 %s30, 1
        %s227 = scalar_lea.sflag [#allocation3], %s226
        %s228 = sand.u32 %s30, 1
        %s229 = smul.addr %s228, 128
        %s230 = scalar_lea.vmem [#allocation2], %s229
        %p231 = pneg %p43
        %p232 = pneg %p40
        %p233 = pneg %p64
        %p234 = pneg %p61
        %p235 = pneg %p85
        %p236 = pneg %p82
        %p237 = pneg %p106
        %p238 = pneg %p103
        %p239 = pneg %p132
        %p240 = pneg %p129
        %s241 = sand.u32 %s119, 1
        %s242 = scalar_lea.sflag [#allocation4], %s241
        %s243 = sand.u32 %s119, 1
        %s244 = smul.addr %s243, 64
        %s245 = scalar_lea.vmem [#allocation8], %s244
        %s246 = smul.u32 8, %s22
        %s247 = smul.u32 8, %s22
        %v248 = vld [vmem:[%s213] sm:$0xff]
        %v249 = vld [vmem:[%s213 + $0x8] sm:$0xff]
        %v250 = vld [vmem:[%s213 + $0x10] sm:$0xff]
        %v251 = vld [vmem:[%s213 + $0x18] sm:$0xff]
        %v252 = vld [vmem:[%s213 + $0x20] sm:$0xff]
        %v253 = vld [vmem:[%s213 + $0x28] sm:$0xff]
        %v254 = vld [vmem:[%s213 + $0x30] sm:$0xff]
        %v255 = vld [vmem:[%s213 + $0x38] sm:$0xff]
        %v256 = vld [vmem:[%s213 + $0x40] sm:$0xff]
        %v257 = vld [vmem:[%s213 + $0x48] sm:$0xff]
        %v258 = vld [vmem:[%s213 + $0x50] sm:$0xff]
        %v259 = vld [vmem:[%s213 + $0x58] sm:$0xff]
        %v260 = vld [vmem:[%s213 + $0x60] sm:$0xff]
        %v261 = vld [vmem:[%s213 + $0x68] sm:$0xff]
        %v262 = vld [vmem:[%s213 + $0x70] sm:$0xff]
        %v263 = vld [vmem:[%s213 + $0x78] sm:$0xff]
        %vm264 = vcmask 523264
        %v265 = vsel %vm264, %v248, 0.0
        %266 = vadd.xlane.f32.xlu0 %v265
        %v267 = vpop.xlane.xlu0 %266
        %v268 = vsel %vm264, %v250, 0.0
        %269 = vadd.xlane.f32.xlu0 %v268
        %v270 = vpop.xlane.xlu0 %269
        %v271 = vsel %vm264, %v252, 0.0
        %272 = vadd.xlane.f32.xlu0 %v271
        %v273 = vpop.xlane.xlu0 %272
        %v274 = vsel %vm264, %v254, 0.0
        %275 = vadd.xlane.f32.xlu0 %v274
        %v276 = vpop.xlane.xlu0 %275
        %v277 = vsel %vm264, %v256, 0.0
        %278 = vadd.xlane.f32.xlu0 %v277
        %v279 = vpop.xlane.xlu0 %278
        %v280 = vsel %vm264, %v258, 0.0
        %281 = vadd.xlane.f32.xlu0 %v280
        %v282 = vpop.xlane.xlu0 %281
        %v283 = vsel %vm264, %v260, 0.0
        %284 = vadd.xlane.f32.xlu0 %v283
        %v285 = vpop.xlane.xlu0 %284
        %v286 = vsel %vm264, %v262, 0.0
        %287 = vadd.xlane.f32.xlu0 %v286
        %v288 = vpop.xlane.xlu0 %287
        %v289 = vsel %vm264, %v249, 0.0
        %290 = vadd.xlane.f32.xlu0 %v289
        %v291 = vpop.xlane.xlu0 %290
        %v292 = vsel %vm264, %v251, 0.0
        %293 = vadd.xlane.f32.xlu0 %v292
        %v294 = vpop.xlane.xlu0 %293
        %v295 = vsel %vm264, %v253, 0.0
        %296 = vadd.xlane.f32.xlu0 %v295
        %v297 = vpop.xlane.xlu0 %296
        %v298 = vsel %vm264, %v255, 0.0
        %299 = vadd.xlane.f32.xlu0 %v298
        %v300 = vpop.xlane.xlu0 %299
        %v301 = vsel %vm264, %v257, 0.0
        %302 = vadd.xlane.f32.xlu0 %v301
        %v303 = vpop.xlane.xlu0 %302
        %v304 = vsel %vm264, %v259, 0.0
        %305 = vadd.xlane.f32.xlu0 %v304
        %v306 = vpop.xlane.xlu0 %305
        %v307 = vsel %vm264, %v261, 0.0
        %308 = vadd.xlane.f32.xlu0 %v307
        %v309 = vpop.xlane.xlu0 %308
        %v310 = vsel %vm264, %v263, 0.0
        %311 = vadd.xlane.f32.xlu0 %v310
        %v312 = vpop.xlane.xlu0 %311
        %v313 = vadd.f32 %v267, %v291
        %v314 = vadd.f32 %v270, %v294
        %v315 = vadd.f32 %v273, %v297
        %v316 = vadd.f32 %v276, %v300
        %v317 = vadd.f32 %v279, %v303
        %v318 = vadd.f32 %v282, %v306
        %v319 = vadd.f32 %v285, %v309
        %v320 = vadd.f32 %v288, %v312
        %v321 = vmul.f32 %v313, 0.0078125
        %v322 = vmul.f32 %v314, 0.0078125
        %v323 = vmul.f32 %v315, 0.0078125
        %v324 = vmul.f32 %v316, 0.0078125
        %v325 = vmul.f32 %v317, 0.0078125
        %v326 = vmul.f32 %v318, 0.0078125
        %v327 = vmul.f32 %v319, 0.0078125
        %v328 = vmul.f32 %v320, 0.0078125
        %v329 = vsub.f32 %v248, %v321
        %v330 = vsub.f32 %v250, %v322
        %v331 = vsub.f32 %v252, %v323
        %v332 = vsub.f32 %v254, %v324
        %v333 = vsub.f32 %v256, %v325
        %v334 = vsub.f32 %v258, %v326
        %v335 = vsub.f32 %v260, %v327
        %v336 = vsub.f32 %v262, %v328
        %v337 = vsub.f32 %v249, %v321
        %v338 = vsub.f32 %v251, %v322
        %v339 = vsub.f32 %v253, %v323
        %v340 = vsub.f32 %v255, %v324
        %v341 = vsub.f32 %v257, %v325
        %v342 = vsub.f32 %v259, %v326
        %v343 = vsub.f32 %v261, %v327
        %v344 = vsub.f32 %v263, %v328
        %v345 = vmul.f32 %v329, %v329
        %v346 = vmul.f32 %v330, %v330
        %v347 = vmul.f32 %v331, %v331
        %v348 = vmul.f32 %v332, %v332
        %v349 = vmul.f32 %v333, %v333
        %v350 = vmul.f32 %v334, %v334
        %v351 = vmul.f32 %v335, %v335
        %v352 = vmul.f32 %v336, %v336
        %v353 = vsel %vm264, %v345, 0.0
        %354 = vadd.xlane.f32.xlu0 %v353
        %v355 = vpop.xlane.xlu0 %354
        %v356 = vsel %vm264, %v346, 0.0
        %357 = vadd.xlane.f32.xlu0 %v356
        %v358 = vpop.xlane.xlu0 %357
        %v359 = vsel %vm264, %v347, 0.0
        %360 = vadd.xlane.f32.xlu0 %v359
        %v361 = vpop.xlane.xlu0 %360
        %v362 = vsel %vm264, %v348, 0.0
        %363 = vadd.xlane.f32.xlu0 %v362
        %v364 = vpop.xlane.xlu0 %363
        %v365 = vsel %vm264, %v349, 0.0
        %366 = vadd.xlane.f32.xlu0 %v365
        %v367 = vpop.xlane.xlu0 %366
        %v368 = vsel %vm264, %v350, 0.0
        %369 = vadd.xlane.f32.xlu0 %v368
        %v370 = vpop.xlane.xlu0 %369
        %v371 = vsel %vm264, %v351, 0.0
        %372 = vadd.xlane.f32.xlu0 %v371
        %v373 = vpop.xlane.xlu0 %372
        %v374 = vsel %vm264, %v352, 0.0
        %375 = vadd.xlane.f32.xlu0 %v374
        %v376 = vpop.xlane.xlu0 %375
        %v377 = vmul.f32 %v337, %v337
        %v378 = vmul.f32 %v338, %v338
        %v379 = vmul.f32 %v339, %v339
        %v380 = vmul.f32 %v340, %v340
        %v381 = vmul.f32 %v341, %v341
        %v382 = vmul.f32 %v342, %v342
        %v383 = vmul.f32 %v343, %v343
        %v384 = vmul.f32 %v344, %v344
        %v385 = vsel %vm264, %v377, 0.0
        %386 = vadd.xlane.f32.xlu0 %v385
        %v387 = vpop.xlane.xlu0 %386
        %v388 = vsel %vm264, %v378, 0.0
        %389 = vadd.xlane.f32.xlu0 %v388
        %v390 = vpop.xlane.xlu0 %389
        %v391 = vsel %vm264, %v379, 0.0
        %392 = vadd.xlane.f32.xlu0 %v391
        %v393 = vpop.xlane.xlu0 %392
        %v394 = vsel %vm264, %v380, 0.0
        %395 = vadd.xlane.f32.xlu0 %v394
        %v396 = vpop.xlane.xlu0 %395
        %v397 = vsel %vm264, %v381, 0.0
        %398 = vadd.xlane.f32.xlu0 %v397
        %v399 = vpop.xlane.xlu0 %398
        %v400 = vsel %vm264, %v382, 0.0
        %401 = vadd.xlane.f32.xlu0 %v400
        %v402 = vpop.xlane.xlu0 %401
        %v403 = vsel %vm264, %v383, 0.0
        %404 = vadd.xlane.f32.xlu0 %v403
        %v405 = vpop.xlane.xlu0 %404
        %v406 = vsel %vm264, %v384, 0.0
        %407 = vadd.xlane.f32.xlu0 %v406
        %v408 = vpop.xlane.xlu0 %407
        %v409 = vadd.f32 %v355, %v387
        %v410 = vadd.f32 %v358, %v390
        %v411 = vadd.f32 %v361, %v393
        %v412 = vadd.f32 %v364, %v396
        %v413 = vadd.f32 %v367, %v399
        %v414 = vadd.f32 %v370, %v402
        %v415 = vadd.f32 %v373, %v405
        %v416 = vadd.f32 %v376, %v408
        %v417 = vmul.f32 %v409, 0.0078125
        %v418 = vmul.f32 %v410, 0.0078125
        %v419 = vmul.f32 %v411, 0.0078125
        %v420 = vmul.f32 %v412, 0.0078125
        %v421 = vmul.f32 %v413, 0.0078125
        %v422 = vmul.f32 %v414, 0.0078125
        %v423 = vmul.f32 %v415, 0.0078125
        %v424 = vmul.f32 %v416, 0.0078125
        %v425 = vadd.f32 %v417, 1e-05
        %v426 = vadd.f32 %v418, 1e-05
        %v427 = vadd.f32 %v419, 1e-05
        %v428 = vadd.f32 %v420, 1e-05
        %v429 = vadd.f32 %v421, 1e-05
        %v430 = vadd.f32 %v422, 1e-05
        %v431 = vadd.f32 %v423, 1e-05
        %v432 = vadd.f32 %v424, 1e-05
        %v433 = vrsqrt.pop %v425
        %v434 = vrsqrt.pop %v426
        %v435 = vrsqrt.pop %v427
        %v436 = vrsqrt.pop %v428
        %v437 = vrsqrt.pop %v429
        %v438 = vrsqrt.pop %v430
        %v439 = vrsqrt.pop %v431
        %v440 = vrsqrt.pop %v432
        %v441 = vmul.f32 %v329, %v433
        %v442 = vmul.f32 %v330, %v434
        %v443 = vmul.f32 %v331, %v435
        %v444 = vmul.f32 %v332, %v436
        %v445 = vmul.f32 %v333, %v437
        %v446 = vmul.f32 %v334, %v438
        %v447 = vmul.f32 %v335, %v439
        %v448 = vmul.f32 %v336, %v440
        %v449 = vmul.f32 %v337, %v433
        %v450 = vmul.f32 %v338, %v434
        %v451 = vmul.f32 %v339, %v435
        %v452 = vmul.f32 %v340, %v436
        %v453 = vmul.f32 %v341, %v437
        %v454 = vmul.f32 %v342, %v438
        %v455 = vmul.f32 %v343, %v439
        %v456 = vmul.f32 %v344, %v440
        %v457 = vld [vmem:[#allocation5] sm:$0xff]
        %v458 = vld [vmem:[#allocation5 + $0x8] sm:$0xff]
        %v459 = vld [vmem:[#allocation5 + $0x10] sm:$0xff]
        %v460 = vld [vmem:[#allocation5 + $0x18] sm:$0xff]
        %v461 = vld [vmem:[#allocation5 + $0x20] sm:$0xff]
        %v462 = vld [vmem:[#allocation5 + $0x28] sm:$0xff]
        %v463 = vld [vmem:[#allocation5 + $0x30] sm:$0xff]
        %v464 = vld [vmem:[#allocation5 + $0x38] sm:$0xff]
        %v465 = vld [vmem:[#allocation7] sm:$0xff]
        %v466 = vld [vmem:[#allocation7 + $0x8] sm:$0xff]
        %v467 = vld [vmem:[#allocation7 + $0x10] sm:$0xff]
        %v468 = vld [vmem:[#allocation7 + $0x18] sm:$0xff]
        %v469 = vld [vmem:[#allocation7 + $0x20] sm:$0xff]
        %v470 = vld [vmem:[#allocation7 + $0x28] sm:$0xff]
        %v471 = vld [vmem:[#allocation7 + $0x30] sm:$0xff]
        %v472 = vld [vmem:[#allocation7 + $0x38] sm:$0xff]
        %v474 = vsel %vm264, %v449, 0
        %v477 = vsel %vm264, %v450, 0
        %v480 = vsel %vm264, %v451, 0
        %v483 = vsel %vm264, %v452, 0
        %v486 = vsel %vm264, %v453, 0
        %v489 = vsel %vm264, %v454, 0
        %v492 = vsel %vm264, %v455, 0
        %v495 = vsel %vm264, %v456, 0
        %497 = vmatprep.subr.mxu0 0.0
        %498 = vmatpush1.msra.mxu0 %v465
        %499 = vmatprep.subr.mxu0 0.0
        %500 = vmatpush1.msra.mxu0 %v466
        %501 = vmatprep.subr.mxu0 0.0
        %502 = vmatpush1.msra.mxu0 %v467
        %503 = vmatprep.subr.mxu0 0.0
        %504 = vmatpush1.msra.mxu0 %v468
        %505 = vmatprep.subr.mxu0 0.0
        %506 = vmatpush1.msra.mxu0 %v469
        %507 = vmatprep.subr.mxu0 0.0
        %508 = vmatpush1.msra.mxu0 %v470
        %509 = vmatprep.subr.mxu0 0.0
        %510 = vmatpush1.msra.mxu0 %v471
        %511 = vmatprep.subr.mxu0 0.0
        %512 = vmatpush1.msra.mxu0 %v472
        %513 = vmatprep.subr.mxu0 0.0
        %514 = vmatpush1.msra.mxu0 0.0
        %515 = vmatprep.subr.mxu0 0.0
        %516 = vmatpush1.msra.mxu0 0.0
        %517 = vmatprep.subr.mxu0 0.0
        %518 = vmatpush1.msra.mxu0 0.0
        %519 = vmatprep.subr.mxu0 0.0
        %520 = vmatpush1.msra.mxu0 0.0
        %521 = vmatprep.subr.mxu0 0.0
        %522 = vmatpush1.msra.mxu0 0.0
        %523 = vmatprep.subr.mxu0 0.0
        %524 = vmatpush1.msra.mxu0 0.0
        %525 = vmatprep.subr.mxu0 0.0
        %526 = vmatpush1.msra.mxu0 0.0
        %527 = vmatprep.subr.mxu0 0.0
        %528 = vmatpush1.msra.mxu0 0.0
        %529 = vmatprep.subr.mxu0 0.0
        %530 = vmatpush1.msra.mxu0 0.0
        %531 = vmatprep.subr.mxu0 0.0
        %532 = vmatpush1.msra.mxu0 0.0
        %533 = vmatprep.subr.mxu0 0.0
        %534 = vmatpush1.msra.mxu0 0.0
        %535 = vmatprep.subr.mxu0 0.0
        %536 = vmatpush1.msra.mxu0 0.0
        %537 = vmatprep.subr.mxu0 0.0
        %538 = vmatpush1.msra.mxu0 0.0
        %539 = vmatprep.subr.mxu0 0.0
        %540 = vmatpush1.msra.mxu0 0.0
        %541 = vmatprep.subr.mxu0 0.0
        %542 = vmatpush1.msra.mxu0 0.0
        %543 = vmatprep.subr.mxu0 0.0
        %544 = vmatpush1.msra.mxu0 0.0
        %545 = vmatprep.subr.mxu0 0.0
        %546 = vmatpush1.msra.mxu0 0.0
        %547 = vmatprep.subr.mxu0 0.0
        %548 = vmatpush1.msra.mxu0 0.0
        %549 = vmatprep.subr.mxu0 0.0
        %550 = vmatpush1.msra.mxu0 0.0
        %551 = vmatprep.subr.mxu0 0.0
        %552 = vmatpush1.msra.mxu0 0.0
        %553 = vmatprep.subr.mxu0 0.0
        %554 = vmatpush1.msra.mxu0 0.0
        %555 = vmatprep.subr.mxu0 0.0
        %556 = vmatpush1.msra.mxu0 0.0
        %557 = vmatprep.subr.mxu0 0.0
        %558 = vmatpush1.msra.mxu0 0.0
        %559 = vmatprep.subr.mxu0 0.0
        %560 = vmatpush1.msra.mxu0 0.0
        %561 = vmatprep.mubr.f32.mxu0 0.0
        %562 = vmatmul.mubr.f32.gmra.mrb[0].mxu0 %v474
        %v563 = vpop.f32.mrb[0].mxu0
        %v564 = vadd.f32 0.0, %v563
        %v565 = vpop.f32.mrb[0].mxu0
        %566 = vmatprep.mubr.f32.mxu0 0.0
        %567 = vmatmul.mubr.f32.gmra.mrb[0].mxu0 %v477
        %v568 = vpop.f32.mrb[0].mxu0
        %v569 = vadd.f32 0.0, %v568
        %v570 = vpop.f32.mrb[0].mxu0
        %571 = vmatprep.mubr.f32.mxu0 0.0
        %572 = vmatmul.mubr.f32.gmra.mrb[0].mxu0 %v480
        %v573 = vpop.f32.mrb[0].mxu0
        %v574 = vadd.f32 0.0, %v573
        %v575 = vpop.f32.mrb[0].mxu0
        %576 = vmatprep.mubr.f32.mxu0 0.0
        %577 = vmatmul.mubr.f32.gmra.mrb[0].mxu0 %v483
        %v578 = vpop.f32.mrb[0].mxu0
        %v579 = vadd.f32 0.0, %v578
        %v580 = vpop.f32.mrb[0].mxu0
        %581 = vmatprep.mubr.f32.mxu0 0.0
        %582 = vmatmul.mubr.f32.gmra.mrb[0].mxu0 %v486
        %v583 = vpop.f32.mrb[0].mxu0
        %v584 = vadd.f32 0.0, %v583
        %v585 = vpop.f32.mrb[0].mxu0
        %586 = vmatprep.mubr.f32.mxu0 0.0
        %587 = vmatmul.mubr.f32.gmra.mrb[0].mxu0 %v489
        %v588 = vpop.f32.mrb[0].mxu0
        %v589 = vadd.f32 0.0, %v588
        %v590 = vpop.f32.mrb[0].mxu0
        %591 = vmatprep.mubr.f32.mxu0 0.0
        %592 = vmatmul.mubr.f32.gmra.mrb[0].mxu0 %v492
        %v593 = vpop.f32.mrb[0].mxu0
        %v594 = vadd.f32 0.0, %v593
        %v595 = vpop.f32.mrb[0].mxu0
        %596 = vmatprep.mubr.f32.mxu0 0.0
        %597 = vmatmul.mubr.f32.gmra.mrb[0].mxu0 %v495
        %v598 = vpop.f32.mrb[0].mxu0
        %v599 = vadd.f32 0.0, %v598
        %v600 = vpop.f32.mrb[0].mxu0
        %601 = vdwg.mxu0
        %v603 = vsel %vm264, %v441, 0
        %v606 = vsel %vm264, %v442, 0
        %v609 = vsel %vm264, %v443, 0
        %v612 = vsel %vm264, %v444, 0
        %v615 = vsel %vm264, %v445, 0
        %v618 = vsel %vm264, %v446, 0
        %v621 = vsel %vm264, %v447, 0
        %v624 = vsel %vm264, %v448, 0
        %626 = vmatprep.subr.mxu0 0.0
        %627 = vmatpush1.msra.mxu0 %v457
        %628 = vmatprep.subr.mxu0 0.0
        %629 = vmatpush1.msra.mxu0 %v458
        %630 = vmatprep.subr.mxu0 0.0
        %631 = vmatpush1.msra.mxu0 %v459
        %632 = vmatprep.subr.mxu0 0.0
        %633 = vmatpush1.msra.mxu0 %v460
        %634 = vmatprep.subr.mxu0 0.0
        %635 = vmatpush1.msra.mxu0 %v461
        %636 = vmatprep.subr.mxu0 0.0
        %637 = vmatpush1.msra.mxu0 %v462
        %638 = vmatprep.subr.mxu0 0.0
        %639 = vmatpush1.msra.mxu0 %v463
        %640 = vmatprep.subr.mxu0 0.0
        %641 = vmatpush1.msra.mxu0 %v464
        %642 = vmatprep.subr.mxu0 0.0
        %643 = vmatpush1.msra.mxu0 0.0
        %644 = vmatprep.subr.mxu0 0.0
        %645 = vmatpush1.msra.mxu0 0.0
        %646 = vmatprep.subr.mxu0 0.0
        %647 = vmatpush1.msra.mxu0 0.0
        %648 = vmatprep.subr.mxu0 0.0
        %649 = vmatpush1.msra.mxu0 0.0
        %650 = vmatprep.subr.mxu0 0.0
        %651 = vmatpush1.msra.mxu0 0.0
        %652 = vmatprep.subr.mxu0 0.0
        %653 = vmatpush1.msra.mxu0 0.0
        %654 = vmatprep.subr.mxu0 0.0
        %655 = vmatpush1.msra.mxu0 0.0
        %656 = vmatprep.subr.mxu0 0.0
        %657 = vmatpush1.msra.mxu0 0.0
        %658 = vmatprep.subr.mxu0 0.0
        %659 = vmatpush1.msra.mxu0 0.0
        %660 = vmatprep.subr.mxu0 0.0
        %661 = vmatpush1.msra.mxu0 0.0
        %662 = vmatprep.subr.mxu0 0.0
        %663 = vmatpush1.msra.mxu0 0.0
        %664 = vmatprep.subr.mxu0 0.0
        %665 = vmatpush1.msra.mxu0 0.0
        %666 = vmatprep.subr.mxu0 0.0
        %667 = vmatpush1.msra.mxu0 0.0
        %668 = vmatprep.subr.mxu0 0.0
        %669 = vmatpush1.msra.mxu0 0.0
        %670 = vmatprep.subr.mxu0 0.0
        %671 = vmatpush1.msra.mxu0 0.0
        %672 = vmatprep.subr.mxu0 0.0
        %673 = vmatpush1.msra.mxu0 0.0
        %674 = vmatprep.subr.mxu0 0.0
        %675 = vmatpush1.msra.mxu0 0.0
        %676 = vmatprep.subr.mxu0 0.0
        %677 = vmatpush1.msra.mxu0 0.0
        %678 = vmatprep.subr.mxu0 0.0
        %679 = vmatpush1.msra.mxu0 0.0
        %680 = vmatprep.subr.mxu0 0.0
        %681 = vmatpush1.msra.mxu0 0.0
        %682 = vmatprep.subr.mxu0 0.0
        %683 = vmatpush1.msra.mxu0 0.0
        %684 = vmatprep.subr.mxu0 0.0
        %685 = vmatpush1.msra.mxu0 0.0
        %686 = vmatprep.subr.mxu0 0.0
        %687 = vmatpush1.msra.mxu0 0.0
        %688 = vmatprep.subr.mxu0 0.0
        %689 = vmatpush1.msra.mxu0 0.0
        %690 = vmatprep.mubr.f32.mxu0 0.0
        %691 = vmatmul.mubr.f32.gmra.mrb[0].mxu0 %v603
        %v692 = vpop.f32.mrb[0].mxu0
        %v693 = vadd.f32 %v564, %v692
        %v694 = vpop.f32.mrb[0].mxu0
        %695 = vmatprep.mubr.f32.mxu0 0.0
        %696 = vmatmul.mubr.f32.gmra.mrb[0].mxu0 %v606
        %v697 = vpop.f32.mrb[0].mxu0
        %v698 = vadd.f32 %v569, %v697
        %v699 = vpop.f32.mrb[0].mxu0
        %700 = vmatprep.mubr.f32.mxu0 0.0
        %701 = vmatmul.mubr.f32.gmra.mrb[0].mxu0 %v609
        %v702 = vpop.f32.mrb[0].mxu0
        %v703 = vadd.f32 %v574, %v702
        %v704 = vpop.f32.mrb[0].mxu0
        %705 = vmatprep.mubr.f32.mxu0 0.0
        %706 = vmatmul.mubr.f32.gmra.mrb[0].mxu0 %v612
        %v707 = vpop.f32.mrb[0].mxu0
        %v708 = vadd.f32 %v579, %v707
        %v709 = vpop.f32.mrb[0].mxu0
        %710 = vmatprep.mubr.f32.mxu0 0.0
        %711 = vmatmul.mubr.f32.gmra.mrb[0].mxu0 %v615
        %v712 = vpop.f32.mrb[0].mxu0
        %v713 = vadd.f32 %v584, %v712
        %v714 = vpop.f32.mrb[0].mxu0
        %715 = vmatprep.mubr.f32.mxu0 0.0
        %716 = vmatmul.mubr.f32.gmra.mrb[0].mxu0 %v618
        %v717 = vpop.f32.mrb[0].mxu0
        %v718 = vadd.f32 %v589, %v717
        %v719 = vpop.f32.mrb[0].mxu0
        %720 = vmatprep.mubr.f32.mxu0 0.0
        %721 = vmatmul.mubr.f32.gmra.mrb[0].mxu0 %v621
        %v722 = vpop.f32.mrb[0].mxu0
        %v723 = vadd.f32 %v594, %v722
        %v724 = vpop.f32.mrb[0].mxu0
        %725 = vmatprep.mubr.f32.mxu0 0.0
        %726 = vmatmul.mubr.f32.gmra.mrb[0].mxu0 %v624
        %v727 = vpop.f32.mrb[0].mxu0
        %v728 = vadd.f32 %v599, %v727
        %v729 = vpop.f32.mrb[0].mxu0
        %730 = vdwg.mxu0
        %v731 = vld [vmem:[%s3] sm:$0x1]
        %v733 = vlaneseq
        %v734 = vshrl.u32 %v733, 7
        %v735 = vsub.s32 0, %v734
        %v736 = vrot.slane %v731, %v735
        %v738 = vadd.f32 %v693, %v736
        %v739 = vadd.f32 %v698, %v736
        %v740 = vadd.f32 %v703, %v736
        %v741 = vadd.f32 %v708, %v736
        %v742 = vadd.f32 %v713, %v736
        %v743 = vadd.f32 %v718, %v736
        %v744 = vadd.f32 %v723, %v736
        %v745 = vadd.f32 %v728, %v736
        %746 = vst [vmem:[%s245] sm:$0xff] %v738
        %747 = vst [vmem:[%s245 + $0x8] sm:$0xff] %v739
        %748 = vst [vmem:[%s245 + $0x10] sm:$0xff] %v740
        %749 = vst [vmem:[%s245 + $0x18] sm:$0xff] %v741
        %750 = vst [vmem:[%s245 + $0x20] sm:$0xff] %v742
        %751 = vst [vmem:[%s245 + $0x28] sm:$0xff] %v743
        %752 = vst [vmem:[%s245 + $0x30] sm:$0xff] %v744
        %753 = vst [vmem:[%s245 + $0x38] sm:$0xff] %v745
        %s754 = sand.u32 %s119, 1
        %s755 = scalar_lea.sflag [#allocation4], %s754
        %s756 = sand.u32 %s119, 1
        %s757 = smul.addr %s756, 64
        %s758 = scalar_lea.vmem [#allocation8], %s757
        // Predicated region
        $region49: #{tpu_custom_call.1} parent=35 // pred_check
          %p759 = pneg %p129
        $region50: #{tpu_custom_call.1} parent=35 // pred_check_branch
          %761 = sbr.rel (%p759) target = $region52
        $region51: #{tpu_custom_call.1} parent=35 // pred_region
          %s762 = smul.u32 8, %s22
          %s764 = ssub.s32 1024, 1024
          %765 = vsyncadd %s755, %s764
          %s766 = smul.addr %s762, 128
          %s767 = scalar_lea.hbm %s4, %s766
          %s768 = sshll.u32 %s758, 4
          %s769 = int_to_ptr.vmem [resolvable:$true] %s768
          %774 = dma.vmem_to_hbm [thread:$0]  %s769, 1024, %s767, %s755, 128, 128, 8
        $region52: #{tpu_custom_call.1} parent=35 // pred_fallthru
          _
      $region36: #{tpu_custom_call.1} parent=5 // pred_fallthru
        _
      %p775 = scmp.le.s32.totalorder 2, %s17
      // Predicated region
      $region53: #{tpu_custom_call.1} parent=5 // pred_check
        %p776 = pneg %p775
      $region54: #{tpu_custom_call.1} parent=5 // pred_check_branch
        %778 = sbr.rel (%p776) target = $region56
      $region55: #{tpu_custom_call.1} parent=5 // pred_region
        %s779 = ssub.s32 %s17, 2
        // Predicated region
        $region57: #{tpu_custom_call.1} parent=55 // pred_check
          %p780 = pneg %p135
        $region58: #{tpu_custom_call.1} parent=55 // pred_check_branch
          %782 = sbr.rel (%p780) target = $region60
        $region59: #{tpu_custom_call.1} parent=55 // pred_region
          %s783 = sand.u32 %s120, 1
          %s784 = scalar_lea.sflag [#allocation4], %s783
          %s785 = sand.u32 %s120, 1
          %s786 = smul.addr %s785, 64
          %s787 = scalar_lea.vmem [#allocation8], %s786
          %788 = dma.done %s784, 1024
        $region60: #{tpu_custom_call.1} parent=55 // pred_fallthru
          _
      $region56: #{tpu_custom_call.1} parent=5 // pred_fallthru
        _
    $region6: #{tpu_custom_call.1} parent=1 // loop_footer
      %s21 = sadd.s32 1, %s17
    $region7: #{tpu_custom_call.1} parent=1 // loop_footer_branch
      %16 = sbr.rel target = $region3
    $region8: #{tpu_custom_call.1} parent=1 // loop_exit
      _
    %789 = vsyncpa [#allocation3], 1
    %s790 = scalar_lea.sflag [#allocation3], 1
    %791 = vsyncpa %s790, 1
    %792 = vsyncpa [#allocation6], 1
    %793 = vsyncpa [#allocation4], 1
    %s794 = scalar_lea.sflag [#allocation4], 1
    %795 = vsyncpa %s794, 1

</llo_original>
